<compile_context>
chip_gen: v6e
topology: v6e:2x2x1
jax: 0.10.0
libtpu: 0.0.40
codegen_flags: <defaults>
</compile_context>

<pallas_src>
import jax
import jax.numpy as jnp
from jax import lax
from jax.experimental import pallas as pl
from jax.experimental.pallas import tpu as pltpu


def _round_up(x, m):
    return ((x + m - 1) // m) * m


def _masked_set_score_kernel(attr_u_ref, attr_i_ref, user_ref, item_ref,
                             lens_ref, out_ref):
    au = attr_u_ref[...].astype(jnp.float32)   # (TN, L, E)
    ai = attr_i_ref[...].astype(jnp.float32)   # (TN, L, E)
    u = user_ref[...].astype(jnp.float32)      # (TN, E)
    it = item_ref[...].astype(jnp.float32)     # (TN, E)
    lens = lens_ref[...]                       # (TN, 1) int32

    tn, L, _ = au.shape
    # Validity mask built in-kernel (1.0 = valid attr position, 0.0 = padding).
    pos = lax.broadcasted_iota(jnp.int32, (tn, L), 1)
    m = (pos < lens).astype(jnp.float32)       # (TN, L)

    # Reassociated reduction (exact: the 0/1 mask is independent of the embed
    # axis and m^2 == m, so masking once before the L-sum matches the torch
    # double-masked matmul + sum):
    #   1) masked sum over set-length L       -> (TN, E)   (VPU adds)
    #   2) one lane reduction over embed E    -> (TN, 1)
    mu = jnp.sum(m[:, :, None] * au, axis=1)   # (TN, E)
    mi = jnp.sum(m[:, :, None] * ai, axis=1)   # (TN, E)
    out_ref[...] = jnp.sum(mu * u + mi * it, axis=-1, keepdims=True)


def masked_set_score(attr_u, attr_i, user_e, item_e, lens, *, tile_n=512):
    """score[n] = sum_l valid[n,l]*(attr_u[n,l].u[n] + attr_i[n,l].i[n])."""
    N, L, E = attr_u.shape
    tn = min(tile_n, _round_up(N, 8))          # rows per grid step (mult of 8)
    n_pad = _round_up(N, tn)
    if n_pad != N:
        pad = n_pad - N
        attr_u = jnp.pad(attr_u, ((0, pad), (0, 0), (0, 0)))
        attr_i = jnp.pad(attr_i, ((0, pad), (0, 0), (0, 0)))
        user_e = jnp.pad(user_e, ((0, pad), (0, 0)))
        item_e = jnp.pad(item_e, ((0, pad), (0, 0)))
        lens = jnp.pad(lens, ((0, pad),))      # lens=0 -> all-pad row -> score 0
    lens2d = lens.astype(jnp.int32)[:, None]   # (n_pad, 1)

    out = pl.pallas_call(
        _masked_set_score_kernel,
        out_shape=jax.ShapeDtypeStruct((n_pad, 1), jnp.float32),
        grid=(n_pad // tn,),
        in_specs=[
            pl.BlockSpec((tn, L, E), lambda i: (i, 0, 0)),
            pl.BlockSpec((tn, L, E), lambda i: (i, 0, 0)),
            pl.BlockSpec((tn, E), lambda i: (i, 0)),
            pl.BlockSpec((tn, E), lambda i: (i, 0)),
            pl.BlockSpec((tn, 1), lambda i: (i, 0)),
        ],
        out_specs=pl.BlockSpec((tn, 1), lambda i: (i, 0)),
        compiler_params=pltpu.CompilerParams(
            dimension_semantics=("parallel",)),
    )(attr_u, attr_i, user_e, item_e, lens2d)
    return out[:N]


def init_attr_network_params(key, vocab_size, user_num, item_num, emb_size):
    """Deterministic uniform(-0.1, 0.1) init, matching torch init_weights."""
    initrange = 0.1
    k1, k2, k3, k4 = jax.random.split(key, 4)
    uni = lambda k, shape: jax.random.uniform(
        k, shape, jnp.float32, -initrange, initrange)
    return {
        "user_emb": uni(k1, (user_num, emb_size)),
        "item_emb": uni(k2, (item_num, emb_size)),
        "attr_emb_user": uni(k3, (vocab_size, emb_size)),
        "attr_emb_item": uni(k4, (vocab_size, emb_size)),
    }


def attr_network_forward(params, pos_attr_set, pos_attr_lens, neg_attr_set,
                         neg_attr_lens, neg_attr_set_num, user_ids, item_ids):
    # Embedding gathers stay in XLA glue.
    # TODO(synk): for production sizes, scalar-prefetch the attr ids and gather
    # from VMEM-resident embedding tables inside the kernel to avoid the
    # (N, L, E) HBM round-trip of the gathered tensors.
    pos_u = params["attr_emb_user"][pos_attr_set]   # (B, Lp, E)
    pos_i = params["attr_emb_item"][pos_attr_set]   # (B, Lp, E)
    neg_u = params["attr_emb_user"][neg_attr_set]   # (B*neg, Ln, E)
    neg_i = params["attr_emb_item"][neg_attr_set]   # (B*neg, Ln, E)
    user_embed = params["user_emb"][user_ids]       # (B, E)
    item_embed = params["item_emb"][item_ids]       # (B, E)

    # pos_attr_set_score : (B, 1)
    pos_score = masked_set_score(pos_u, pos_i, user_embed, item_embed,
                                 pos_attr_lens)

    # TODO(synk): the repeat_interleave could instead be a scalar-prefetched
    # row->batch index in the user/item BlockSpec index_map; it is only ~1/L of
    # the kernel's HBM traffic so it is kept as XLA glue here.
    neg_user_embed = jnp.repeat(user_embed, neg_attr_set_num, axis=0)
    neg_item_embed = jnp.repeat(item_embed, neg_attr_set_num, axis=0)

    # neg_attr_set_score : (B*neg, 1)
    neg_score = masked_set_score(neg_u, neg_i, neg_user_embed, neg_item_embed,
                                 neg_attr_lens)

    dup_pos_score = jnp.repeat(pos_score, neg_attr_set_num, axis=0)
    logits = dup_pos_score - neg_score               # (B*neg, 1)

    # TODO(synk): torch f_generate_mask trims to lens.max() (dynamic shape);
    # here the static padded width Lp is used (score semantics identical).
    Lp = pos_attr_set.shape[1]
    pos_attr_mask = ~(jnp.arange(Lp)[None, :] < pos_attr_lens[:, None])
    return logits, pos_attr_mask


def attr_network_forward_ref(params, pos_attr_set, pos_attr_lens, neg_attr_set,
                             neg_attr_lens, neg_attr_set_num, user_ids,
                             item_ids):
    """Pure-JAX reference transliterated from the torch forward."""
    pos_u = params["attr_emb_user"][pos_attr_set]
    pos_i = params["attr_emb_item"][pos_attr_set]
    neg_u = params["attr_emb_user"][neg_attr_set]
    neg_i = params["attr_emb_item"][neg_attr_set]
    user_embed = params["user_emb"][user_ids]
    item_embed = params["item_emb"][item_ids]

    def gen_mask(lens, max_len):
        return ~(jnp.arange(max_len)[None, :] < lens[:, None])  # True = pad

    pos_mask = gen_mask(pos_attr_lens, pos_attr_set.shape[1])
    neg_mask = gen_mask(neg_attr_lens, neg_attr_set.shape[1])

    def score(attr, emb, mask):
        nm = (~mask)[..., None].astype(attr.dtype)               # (N, L, 1)
        s = jnp.matmul(attr * nm, emb[..., None])                # (N, L, 1)
        return jnp.sum(s * nm, axis=1)                           # (N, 1)

    pos_score = (score(pos_u, user_embed, pos_mask)
                 + score(pos_i, item_embed, pos_mask))
    neg_user_embed = jnp.repeat(user_embed, neg_attr_set_num, axis=0)
    neg_item_embed = jnp.repeat(item_embed, neg_attr_set_num, axis=0)
    neg_score = (score(neg_u, neg_user_embed, neg_mask)
                 + score(neg_i, neg_item_embed, neg_mask))
    dup = jnp.repeat(pos_score, neg_attr_set_num, axis=0)
    return dup - neg_score, pos_mask


if __name__ == "__main__":
    # small synthetic config
    vocab_size, user_num, item_num = 50, 10, 12
    emb_size = 32            # attr_emb_size == user_emb_size == item_emb_size
    B, neg_num, Lp, Ln = 2, 3, 8, 8

    key = jax.random.PRNGKey(0)
    kp, k1, k2, k3, k4 = jax.random.split(key, 5)
    params = init_attr_network_params(kp, vocab_size, user_num, item_num,
                                      emb_size)

    pos_attr_set = jax.random.randint(k1, (B, Lp), 0, vocab_size)
    neg_attr_set = jax.random.randint(k2, (B * neg_num, Ln), 0, vocab_size)
    pos_attr_lens = jnp.array([Lp, 5], dtype=jnp.int32)
    neg_attr_lens = jax.random.randint(k3, (B * neg_num,), 3, Ln + 1)
    user_ids = jax.random.randint(k4, (B,), 0, user_num)
    item_ids = jnp.array([1, 7], dtype=jnp.int32)

    logits, pos_mask = attr_network_forward(
        params, pos_attr_set, pos_attr_lens, neg_attr_set, neg_attr_lens,
        neg_num, user_ids, item_ids)
    logits = jax.block_until_ready(logits)

    ref_logits, ref_mask = attr_network_forward_ref(
        params, pos_attr_set, pos_attr_lens, neg_attr_set, neg_attr_lens,
        neg_num, user_ids, item_ids)

    assert logits.shape == (B * neg_num, 1)
    assert bool(jnp.allclose(logits, ref_logits, atol=1e-5, rtol=1e-5))
    assert bool(jnp.array_equal(pos_mask, ref_mask))
    print("KERNEL_OK")
</pallas_src>

<mosaic_0001>
module attributes {stable_mosaic.version = 11 : i64} {
  func.func @_masked_set_score_kernel(%arg0: i32, %arg1: memref<8x8x32xf32, #tpu.memory_space<vmem>>, %arg2: memref<8x8x32xf32, #tpu.memory_space<vmem>>, %arg3: memref<8x32xf32, #tpu.memory_space<vmem>>, %arg4: memref<8x32xf32, #tpu.memory_space<vmem>>, %arg5: memref<8x1xi32, #tpu.memory_space<vmem>>, %arg6: memref<8x1xf32, #tpu.memory_space<vmem>>) attributes {dimension_semantics = [#tpu.dimension_semantics<parallel>], iteration_bounds = array<i64: 1>, scalar_prefetch = 0 : i64, scratch_operands = 0 : i64, tpu.core_type = #tpu.core_type<tc>, window_params = [{transform_indices = @transform_0, window_bounds = array<i64: 8, 8, 32>}, {transform_indices = @transform_1, window_bounds = array<i64: 8, 8, 32>}, {transform_indices = @transform_2, window_bounds = array<i64: 8, 32>}, {transform_indices = @transform_3, window_bounds = array<i64: 8, 32>}, {transform_indices = @transform_4, window_bounds = array<i64: 8, 1>}, {transform_indices = @transform_5, window_bounds = array<i64: 8, 1>}]} {
    %c0 = arith.constant 0 : index
    %c0_0 = arith.constant 0 : index
    %c0_1 = arith.constant 0 : index
    %0 = vector.load %arg1[%c0, %c0_0, %c0_1] : memref<8x8x32xf32, #tpu.memory_space<vmem>>, vector<8x8x32xf32>
    %c0_2 = arith.constant 0 : index
    %c0_3 = arith.constant 0 : index
    %c0_4 = arith.constant 0 : index
    %1 = vector.load %arg2[%c0_2, %c0_3, %c0_4] : memref<8x8x32xf32, #tpu.memory_space<vmem>>, vector<8x8x32xf32>
    %c0_5 = arith.constant 0 : index
    %c0_6 = arith.constant 0 : index
    %2 = vector.load %arg3[%c0_5, %c0_6] : memref<8x32xf32, #tpu.memory_space<vmem>>, vector<8x32xf32>
    %c0_7 = arith.constant 0 : index
    %c0_8 = arith.constant 0 : index
    %3 = vector.load %arg4[%c0_7, %c0_8] : memref<8x32xf32, #tpu.memory_space<vmem>>, vector<8x32xf32>
    %c0_9 = arith.constant 0 : index
    %c0_10 = arith.constant 0 : index
    %4 = vector.load %arg5[%c0_9, %c0_10] : memref<8x1xi32, #tpu.memory_space<vmem>>, vector<8x1xi32>
    %5 = tpu.iota {dimensions = array<i32: 1>} : vector<8x8xi32>
    %6 = vector.broadcast %4 : vector<8x1xi32> to vector<8x8xi32>
    %7 = arith.cmpi slt, %5, %6 : vector<8x8xi32>
    %8 = arith.extui %7 : vector<8x8xi1> to vector<8x8xi32>
    %9 = arith.sitofp %8 : vector<8x8xi32> to vector<8x8xf32>
    %10 = vector.shape_cast %9 : vector<8x8xf32> to vector<8x8x1xf32>
    %11 = vector.broadcast %10 : vector<8x8x1xf32> to vector<8x8x32xf32>
    %12 = arith.mulf %11, %0 : vector<8x8x32xf32>
    %cst = arith.constant dense<0.000000e+00> : vector<8x32xf32>
    %13 = vector.multi_reduction <add>, %12, %cst [1] : vector<8x8x32xf32> to vector<8x32xf32>
    %14 = vector.shape_cast %9 : vector<8x8xf32> to vector<8x8x1xf32>
    %15 = vector.broadcast %14 : vector<8x8x1xf32> to vector<8x8x32xf32>
    %16 = arith.mulf %15, %1 : vector<8x8x32xf32>
    %cst_11 = arith.constant dense<0.000000e+00> : vector<8x32xf32>
    %17 = vector.multi_reduction <add>, %16, %cst_11 [1] : vector<8x8x32xf32> to vector<8x32xf32>
    %18 = arith.mulf %13, %2 : vector<8x32xf32>
    %19 = arith.mulf %17, %3 : vector<8x32xf32>
    %20 = arith.addf %18, %19 : vector<8x32xf32>
    %cst_12 = arith.constant dense<0.000000e+00> : vector<8xf32>
    %21 = vector.multi_reduction <add>, %20, %cst_12 [1] : vector<8x32xf32> to vector<8xf32>
    %22 = vector.shape_cast %21 : vector<8xf32> to vector<8x1xf32>
    %c0_13 = arith.constant 0 : index
    %c0_14 = arith.constant 0 : index
    %23 = vector.load %arg6[%c0_13, %c0_14] : memref<8x1xf32, #tpu.memory_space<vmem>>, vector<8x1xf32>
    tpu.vector_store %arg6[%c0_13, %c0_14], %22 {strides = array<i32>} : memref<8x1xf32, #tpu.memory_space<vmem>>, vector<8x1xf32>,
    return
  }
  func.func @transform_0(%arg0: i32) -> (i32, i32, i32) {
    %c0_i32 = arith.constant 0 : i32
    %c0_i32_0 = arith.constant 0 : i32
    %c0_i32_1 = arith.constant 0 : i32
    return %arg0, %c0_i32, %c0_i32_0 : i32, i32, i32
  }
  func.func @transform_1(%arg0: i32) -> (i32, i32, i32) {
    %c0_i32 = arith.constant 0 : i32
    %c0_i32_0 = arith.constant 0 : i32
    %c0_i32_1 = arith.constant 0 : i32
    return %arg0, %c0_i32, %c0_i32_0 : i32, i32, i32
  }
  func.func @transform_2(%arg0: i32) -> (i32, i32) {
    %c0_i32 = arith.constant 0 : i32
    %c0_i32_0 = arith.constant 0 : i32
    return %arg0, %c0_i32 : i32, i32
  }
  func.func @transform_3(%arg0: i32) -> (i32, i32) {
    %c0_i32 = arith.constant 0 : i32
    %c0_i32_0 = arith.constant 0 : i32
    return %arg0, %c0_i32 : i32, i32
  }
  func.func @transform_4(%arg0: i32) -> (i32, i32) {
    %c0_i32 = arith.constant 0 : i32
    %c0_i32_0 = arith.constant 0 : i32
    return %arg0, %c0_i32 : i32, i32
  }
  func.func @transform_5(%arg0: i32) -> (i32, i32) {
    %c0_i32 = arith.constant 0 : i32
    %c0_i32_0 = arith.constant 0 : i32
    return %arg0, %c0_i32 : i32, i32
  }
}

</mosaic_0001>

<llo_original>
// kernel: tpu_custom_call.1
$region0: #{tpu_custom_call.1}
  #allocation0 [shape = 'u32[]', space=smem, size = 0x4, offset = 0x4, fixed_abs, tag = 'smem constant byte address 0x4 - core index']
  #allocation1 [shape = 'u32[144,128]{1,0:T(1,128)}', space=vmem, size = 0x12000, scoped, tag = 'internal scratch']
  %s0 = inlined_call_operand.hbm [shape: f32[8,8,32], index: 0, kind: input, shape index: {}]
  %s1 = inlined_call_operand.hbm [shape: f32[8,8,32], index: 1, kind: input, shape index: {}]
  %s2 = inlined_call_operand.vmem [shape: f32[8,32], index: 2, kind: input, shape index: {}]
  %s3 = inlined_call_operand.hbm [shape: f32[8,32], index: 3, kind: input, shape index: {}]
  %s4 = inlined_call_operand.vmem [shape: s32[8,1], index: 4, kind: input, shape index: {}]
  %s5 = inlined_call_operand.vmem [shape: f32[8,1], index: 5, kind: output, shape index: {}]
  %s6 = sld [smem:[#allocation0]]
  $region42: #{tpu_custom_call.1} parent=0
    _
  %s8 = ssub.s32 1, %s6
  %s9 = scalar_select 0, %s8, %s6
  $region1: #{tpu_custom_call.1} parent=0
    #allocation2 [shape = 'u8[32768]{0}', space=vmem, size = 0x8000, scoped, tag = 'input window, operand 0, single buffered']
    #allocation3 [shape = 's32[1]{0}', space=sflag, size = 0x4, scoped, tag = 'scoped memory for tpu_custom_call.1']
    #allocation4 [shape = 'u8[32768]{0}', space=vmem, size = 0x8000, scoped, tag = 'input window, operand 1, single buffered']
    #allocation5 [shape = 's32[1]{0}', space=sflag, size = 0x4, scoped, tag = 'scoped memory for tpu_custom_call.1']
    #allocation6 [shape = 'u8[4096]{0}', space=vmem, size = 0x1000, scoped, tag = 'input window, operand 3, single buffered']
    %10 = vsyncpa [#allocation3], 0
    %11 = vsyncpa [#allocation5], 0
    // Predicated region
    $region2: #{tpu_custom_call.1} parent=1 // pred_check
      _
    $region3: #{tpu_custom_call.1} parent=1 // pred_check_branch
      %13 = sbr.rel (0) target = $region5
    $region4: #{tpu_custom_call.1} parent=1 // pred_region
      %s15 = ssub.s32 1024, 1024
      %16 = vsyncadd [#allocation3], %s15
      %s17 = sshll.u32 [#allocation2], 4
      %s18 = int_to_ptr.vmem [resolvable:$true] %s17
      %23 = dma.hbm_to_vmem [thread:$0]  %s0, 1024, %s18, [#allocation3], 128, 128, 8
    $region5: #{tpu_custom_call.1} parent=1 // pred_fallthru
      _
    // Predicated region
    $region6: #{tpu_custom_call.1} parent=1 // pred_check
      _
    $region7: #{tpu_custom_call.1} parent=1 // pred_check_branch
      %25 = sbr.rel (0) target = $region9
    $region8: #{tpu_custom_call.1} parent=1 // pred_region
      %s27 = ssub.s32 1024, 1024
      %28 = vsyncadd [#allocation5], %s27
      %s29 = sshll.u32 [#allocation4], 4
      %s30 = int_to_ptr.vmem [resolvable:$true] %s29
      %35 = dma.hbm_to_vmem [thread:$0]  %s1, 1024, %s30, [#allocation5], 128, 128, 8
    $region9: #{tpu_custom_call.1} parent=1 // pred_fallthru
      _
    // Predicated region
    $region10: #{tpu_custom_call.1} parent=1 // pred_check
      _
    $region11: #{tpu_custom_call.1} parent=1 // pred_check_branch
      %37 = sbr.rel (0) target = $region13
    $region12: #{tpu_custom_call.1} parent=1 // pred_region
      _
    $region13: #{tpu_custom_call.1} parent=1 // pred_fallthru
      _
    // Predicated region
    $region14: #{tpu_custom_call.1} parent=1 // pred_check
      _
    $region15: #{tpu_custom_call.1} parent=1 // pred_check_branch
      %39 = sbr.rel (0) target = $region17
    $region16: #{tpu_custom_call.1} parent=1 // pred_region
      %s41 = ssub.s32 128, 128
      %42 = vsyncadd [#allocation5], %s41
      %s44 = sshll.u32 [#allocation6], 4
      %s45 = int_to_ptr.vmem [resolvable:$true] %s44
      %47 = dma.hbm_to_vmem [thread:$0]  %s3, 128, %s45, [#allocation5]
    $region17: #{tpu_custom_call.1} parent=1 // pred_fallthru
      _
    // Predicated region
    $region18: #{tpu_custom_call.1} parent=1 // pred_check
      _
    $region19: #{tpu_custom_call.1} parent=1 // pred_check_branch
      %49 = sbr.rel (0) target = $region21
    $region20: #{tpu_custom_call.1} parent=1 // pred_region
      _
    $region21: #{tpu_custom_call.1} parent=1 // pred_fallthru
      _
    // Predicated region
    $region22: #{tpu_custom_call.1} parent=1 // pred_check
      _
    $region23: #{tpu_custom_call.1} parent=1 // pred_check_branch
      %51 = sbr.rel (0) target = $region25
    $region24: #{tpu_custom_call.1} parent=1 // pred_region
      %52 = dma.done [#allocation3], 1024
    $region25: #{tpu_custom_call.1} parent=1 // pred_fallthru
      _
    // Predicated region
    $region26: #{tpu_custom_call.1} parent=1 // pred_check
      _
    $region27: #{tpu_custom_call.1} parent=1 // pred_check_branch
      %54 = sbr.rel (0) target = $region29
    $region28: #{tpu_custom_call.1} parent=1 // pred_region
      %55 = dma.done [#allocation5], 1024
    $region29: #{tpu_custom_call.1} parent=1 // pred_fallthru
      _
    // Predicated region
    $region30: #{tpu_custom_call.1} parent=1 // pred_check
      _
    $region31: #{tpu_custom_call.1} parent=1 // pred_check_branch
      %57 = sbr.rel (0) target = $region33
    $region32: #{tpu_custom_call.1} parent=1 // pred_region
      %58 = dma.done [#allocation5], 128
    $region33: #{tpu_custom_call.1} parent=1 // pred_fallthru
      _
    %v59 = vld [vmem:[#allocation2] sm:$0xff]
    %v60 = vld [vmem:[#allocation2 + $0x8] sm:$0xff]
    %v61 = vld [vmem:[#allocation2 + $0x10] sm:$0xff]
    %v62 = vld [vmem:[#allocation2 + $0x18] sm:$0xff]
    %v63 = vld [vmem:[#allocation2 + $0x20] sm:$0xff]
    %v64 = vld [vmem:[#allocation2 + $0x28] sm:$0xff]
    %v65 = vld [vmem:[#allocation2 + $0x30] sm:$0xff]
    %v66 = vld [vmem:[#allocation2 + $0x38] sm:$0xff]
    %v67 = vld [vmem:[#allocation4] sm:$0xff]
    %v68 = vld [vmem:[#allocation4 + $0x8] sm:$0xff]
    %v69 = vld [vmem:[#allocation4 + $0x10] sm:$0xff]
    %v70 = vld [vmem:[#allocation4 + $0x18] sm:$0xff]
    %v71 = vld [vmem:[#allocation4 + $0x20] sm:$0xff]
    %v72 = vld [vmem:[#allocation4 + $0x28] sm:$0xff]
    %v73 = vld [vmem:[#allocation4 + $0x30] sm:$0xff]
    %v74 = vld [vmem:[#allocation4 + $0x38] sm:$0xff]
    %v75 = vld [vmem:[%s2] sm:$0xff]
    %v76 = vld [vmem:[#allocation6] sm:$0xff]
    %v77 = vld [vmem:[%s4] sm:$0xff]
    %v78 = vlaneseq
    %v79 = vand.u32 %v78, 127
    %80 = vset.pattern.permute.xlu0 0
    %81 = vperm.xlu0 %80, %v77
    %v82 = vpop.permute.xlu0 %81
    %vm83 = vcmp.lt.s32.totalorder %v79, %v82
    %v84 = vsel %vm83, 1, 0
    %v85 = vcvt.s32.f32 %v84
    %v86 = vlaneseq
    %v87 = vshrl.u32 %v86, 7
    %v88 = vsub.s32 0, %v87
    %v89 = vrot.slane %v85, %v88
    %91 = vbcast.lane.b32.xlu0 %v89, 256
    %v92 = vpop.permute.xlu0 %91
    %v93 = vlaneseq
    %v94 = vshrl.u32 %v93, 7
    %v95 = vsub.s32 1, %v94
    %v96 = vrot.slane %v85, %v95
    %98 = vbcast.lane.b32.xlu0 %v96, 256
    %v99 = vpop.permute.xlu0 %98
    %v100 = vlaneseq
    %v101 = vshrl.u32 %v100, 7
    %v102 = vsub.s32 2, %v101
    %v103 = vrot.slane %v85, %v102
    %105 = vbcast.lane.b32.xlu0 %v103, 256
    %v106 = vpop.permute.xlu0 %105
    %v107 = vlaneseq
    %v108 = vshrl.u32 %v107, 7
    %v109 = vsub.s32 3, %v108
    %v110 = vrot.slane %v85, %v109
    %112 = vbcast.lane.b32.xlu0 %v110, 256
    %v113 = vpop.permute.xlu0 %112
    %v114 = vlaneseq
    %v115 = vshrl.u32 %v114, 7
    %v116 = vsub.s32 4, %v115
    %v117 = vrot.slane %v85, %v116
    %119 = vbcast.lane.b32.xlu0 %v117, 256
    %v120 = vpop.permute.xlu0 %119
    %v121 = vlaneseq
    %v122 = vshrl.u32 %v121, 7
    %v123 = vsub.s32 5, %v122
    %v124 = vrot.slane %v85, %v123
    %126 = vbcast.lane.b32.xlu0 %v124, 256
    %v127 = vpop.permute.xlu0 %126
    %v128 = vlaneseq
    %v129 = vshrl.u32 %v128, 7
    %v130 = vsub.s32 6, %v129
    %v131 = vrot.slane %v85, %v130
    %133 = vbcast.lane.b32.xlu0 %v131, 256
    %v134 = vpop.permute.xlu0 %133
    %v135 = vlaneseq
    %v136 = vshrl.u32 %v135, 7
    %v137 = vsub.s32 7, %v136
    %v138 = vrot.slane %v85, %v137
    %140 = vbcast.lane.b32.xlu0 %v138, 256
    %v141 = vpop.permute.xlu0 %140
    %v142 = vmul.f32 %v92, %v59
    %v143 = vmul.f32 %v99, %v60
    %v144 = vmul.f32 %v106, %v61
    %v145 = vmul.f32 %v113, %v62
    %v146 = vmul.f32 %v120, %v63
    %v147 = vmul.f32 %v127, %v64
    %v148 = vmul.f32 %v134, %v65
    %v149 = vmul.f32 %v141, %v66
    %vm150 = vcmask 261120
    %v151 = vsel %vm150, %v142, 0.0
    %v152 = vrot.slane %v151, 4
    %v153 = vadd.f32 %v151, %v152
    %v154 = vrot.slane %v153, 2
    %v155 = vadd.f32 %v153, %v154
    %v156 = vrot.slane %v155, 1
    %v157 = vadd.f32 %v155, %v156
    %v158 = vsel %vm150, %v143, 0.0
    %v159 = vrot.slane %v158, 4
    %v160 = vadd.f32 %v158, %v159
    %v161 = vrot.slane %v160, 2
    %v162 = vadd.f32 %v160, %v161
    %v163 = vrot.slane %v162, 1
    %v164 = vadd.f32 %v162, %v163
    %v165 = vsel %vm150, %v144, 0.0
    %v166 = vrot.slane %v165, 4
    %v167 = vadd.f32 %v165, %v166
    %v168 = vrot.slane %v167, 2
    %v169 = vadd.f32 %v167, %v168
    %v170 = vrot.slane %v169, 1
    %v171 = vadd.f32 %v169, %v170
    %v172 = vsel %vm150, %v145, 0.0
    %v173 = vrot.slane %v172, 4
    %v174 = vadd.f32 %v172, %v173
    %v175 = vrot.slane %v174, 2
    %v176 = vadd.f32 %v174, %v175
    %v177 = vrot.slane %v176, 1
    %v178 = vadd.f32 %v176, %v177
    %v179 = vsel %vm150, %v146, 0.0
    %v180 = vrot.slane %v179, 4
    %v181 = vadd.f32 %v179, %v180
    %v182 = vrot.slane %v181, 2
    %v183 = vadd.f32 %v181, %v182
    %v184 = vrot.slane %v183, 1
    %v185 = vadd.f32 %v183, %v184
    %v186 = vsel %vm150, %v147, 0.0
    %v187 = vrot.slane %v186, 4
    %v188 = vadd.f32 %v186, %v187
    %v189 = vrot.slane %v188, 2
    %v190 = vadd.f32 %v188, %v189
    %v191 = vrot.slane %v190, 1
    %v192 = vadd.f32 %v190, %v191
    %v193 = vsel %vm150, %v148, 0.0
    %v194 = vrot.slane %v193, 4
    %v195 = vadd.f32 %v193, %v194
    %v196 = vrot.slane %v195, 2
    %v197 = vadd.f32 %v195, %v196
    %v198 = vrot.slane %v197, 1
    %v199 = vadd.f32 %v197, %v198
    %v200 = vsel %vm150, %v149, 0.0
    %v201 = vrot.slane %v200, 4
    %v202 = vadd.f32 %v200, %v201
    %v203 = vrot.slane %v202, 2
    %v204 = vadd.f32 %v202, %v203
    %v205 = vrot.slane %v204, 1
    %v206 = vadd.f32 %v204, %v205
    %v207 = vmul.f32 %v92, %v67
    %v208 = vmul.f32 %v99, %v68
    %v209 = vmul.f32 %v106, %v69
    %v210 = vmul.f32 %v113, %v70
    %v211 = vmul.f32 %v120, %v71
    %v212 = vmul.f32 %v127, %v72
    %v213 = vmul.f32 %v134, %v73
    %v214 = vmul.f32 %v141, %v74
    %v215 = vsel %vm150, %v207, 0.0
    %v216 = vrot.slane %v215, 4
    %v217 = vadd.f32 %v215, %v216
    %v218 = vrot.slane %v217, 2
    %v219 = vadd.f32 %v217, %v218
    %v220 = vrot.slane %v219, 1
    %v221 = vadd.f32 %v219, %v220
    %v222 = vsel %vm150, %v208, 0.0
    %v223 = vrot.slane %v222, 4
    %v224 = vadd.f32 %v222, %v223
    %v225 = vrot.slane %v224, 2
    %v226 = vadd.f32 %v224, %v225
    %v227 = vrot.slane %v226, 1
    %v228 = vadd.f32 %v226, %v227
    %v229 = vsel %vm150, %v209, 0.0
    %v230 = vrot.slane %v229, 4
    %v231 = vadd.f32 %v229, %v230
    %v232 = vrot.slane %v231, 2
    %v233 = vadd.f32 %v231, %v232
    %v234 = vrot.slane %v233, 1
    %v235 = vadd.f32 %v233, %v234
    %v236 = vsel %vm150, %v210, 0.0
    %v237 = vrot.slane %v236, 4
    %v238 = vadd.f32 %v236, %v237
    %v239 = vrot.slane %v238, 2
    %v240 = vadd.f32 %v238, %v239
    %v241 = vrot.slane %v240, 1
    %v242 = vadd.f32 %v240, %v241
    %v243 = vsel %vm150, %v211, 0.0
    %v244 = vrot.slane %v243, 4
    %v245 = vadd.f32 %v243, %v244
    %v246 = vrot.slane %v245, 2
    %v247 = vadd.f32 %v245, %v246
    %v248 = vrot.slane %v247, 1
    %v249 = vadd.f32 %v247, %v248
    %v250 = vsel %vm150, %v212, 0.0
    %v251 = vrot.slane %v250, 4
    %v252 = vadd.f32 %v250, %v251
    %v253 = vrot.slane %v252, 2
    %v254 = vadd.f32 %v252, %v253
    %v255 = vrot.slane %v254, 1
    %v256 = vadd.f32 %v254, %v255
    %v257 = vsel %vm150, %v213, 0.0
    %v258 = vrot.slane %v257, 4
    %v259 = vadd.f32 %v257, %v258
    %v260 = vrot.slane %v259, 2
    %v261 = vadd.f32 %v259, %v260
    %v262 = vrot.slane %v261, 1
    %v263 = vadd.f32 %v261, %v262
    %v264 = vsel %vm150, %v214, 0.0
    %v265 = vrot.slane %v264, 4
    %v266 = vadd.f32 %v264, %v265
    %v267 = vrot.slane %v266, 2
    %v268 = vadd.f32 %v266, %v267
    %v269 = vrot.slane %v268, 1
    %v270 = vadd.f32 %v268, %v269
    %v272 = vrot.slane %v75, 1
    %v273 = vrot.slane %v75, 2
    %v274 = vrot.slane %v75, 3
    %v275 = vrot.slane %v75, 4
    %v276 = vrot.slane %v75, 5
    %v277 = vrot.slane %v75, 6
    %v278 = vrot.slane %v75, 7
    %v287 = vmul.f32 %v157, %v75
    %v288 = vmul.f32 %v164, %v272
    %v289 = vmul.f32 %v171, %v273
    %v290 = vmul.f32 %v178, %v274
    %v291 = vmul.f32 %v185, %v275
    %v292 = vmul.f32 %v192, %v276
    %v293 = vmul.f32 %v199, %v277
    %v294 = vmul.f32 %v206, %v278
    %v296 = vrot.slane %v76, 1
    %v297 = vrot.slane %v76, 2
    %v298 = vrot.slane %v76, 3
    %v299 = vrot.slane %v76, 4
    %v300 = vrot.slane %v76, 5
    %v301 = vrot.slane %v76, 6
    %v302 = vrot.slane %v76, 7
    %v311 = vmul.f32 %v221, %v76
    %v312 = vmul.f32 %v228, %v296
    %v313 = vmul.f32 %v235, %v297
    %v314 = vmul.f32 %v242, %v298
    %v315 = vmul.f32 %v249, %v299
    %v316 = vmul.f32 %v256, %v300
    %v317 = vmul.f32 %v263, %v301
    %v318 = vmul.f32 %v270, %v302
    %v319 = vadd.f32 %v287, %v311
    %v320 = vadd.f32 %v288, %v312
    %v321 = vadd.f32 %v289, %v313
    %v322 = vadd.f32 %v290, %v314
    %v323 = vadd.f32 %v291, %v315
    %v324 = vadd.f32 %v292, %v316
    %v325 = vadd.f32 %v293, %v317
    %v326 = vadd.f32 %v294, %v318
    %v335 = vrot.slane %v320, 7
    %vm336 = vcmask 1041409
    %v337 = vsel %vm336, %v335, %v319
    %v338 = vrot.slane %v321, 6
    %vm339 = vcmask 1042434
    %v340 = vsel %vm339, %v338, %v337
    %v341 = vrot.slane %v322, 5
    %vm342 = vcmask 1043459
    %v343 = vsel %vm342, %v341, %v340
    %v344 = vrot.slane %v323, 4
    %vm345 = vcmask 1044484
    %v346 = vsel %vm345, %v344, %v343
    %v347 = vrot.slane %v324, 3
    %vm348 = vcmask 1045509
    %v349 = vsel %vm348, %v347, %v346
    %v350 = vrot.slane %v325, 2
    %vm351 = vcmask 1046534
    %v352 = vsel %vm351, %v350, %v349
    %v353 = vrot.slane %v326, 1
    %vm354 = vcmask 1047559
    %v355 = vsel %vm354, %v353, %v352
    %v357 = vsel %vm150, %v355, 0.0
    %358 = vadd.xlane.f32.xlu0 %v357
    %v359 = vpop.xlane.xlu0 %358
    %vm360 = vcmask 7168
    %361 = vst.msk [vmem:[%s5] sm:$0xff] %vm360, %v359
    // Predicated region
    $region34: #{tpu_custom_call.1} parent=1 // pred_check
      _
    $region35: #{tpu_custom_call.1} parent=1 // pred_check_branch
      %363 = sbr.rel (0) target = $region37
    $region36: #{tpu_custom_call.1} parent=1 // pred_region
      _
    $region37: #{tpu_custom_call.1} parent=1 // pred_fallthru
      _
    // Predicated region
    $region38: #{tpu_custom_call.1} parent=1 // pred_check
      _
    $region39: #{tpu_custom_call.1} parent=1 // pred_check_branch
      %365 = sbr.rel (0) target = $region41
    $region40: #{tpu_custom_call.1} parent=1 // pred_region
      _
    $region41: #{tpu_custom_call.1} parent=1 // pred_fallthru
      _
    %366 = vsyncpa [#allocation3], 1
    %367 = vsyncpa [#allocation5], 1

</llo_original>
